<compile_context>
chip_gen: v7x
topology: tpu7x:2x2x1
jax: 0.10.0
libtpu: 0.0.40
codegen_flags: <defaults>
</compile_context>

<pallas_src>
import functools

import jax
import jax.numpy as jnp
from jax.experimental import pallas as pl
from jax.experimental.pallas import tpu as pltpu

LANES = 128
MAX_BLOCK_ROWS = 1024  # (1024, 128) f32 tile = 512 KiB; 2 inputs x 2 bufs = 2 MiB VMEM


def _dice_bce_kernel(x_ref, t_ref, o_ref, *, activation):
    """Accumulate [sum(x*t), sum(x), sum(t), sum(bce)] lane-wise partials.

    o_ref block is (1, 4, 8, 128) and is resident across the reduction axis
    (its block index only depends on the parallel grid axis), so it doubles
    as the accumulator.
    """
    s = pl.program_id(1)

    @pl.when(s == 0)
    def _():
        o_ref[...] = jnp.zeros_like(o_ref)

    z = x_ref[...].astype(jnp.float32)
    t = t_ref[...].astype(jnp.float32)

    if activation:
        x = jax.nn.sigmoid(z)
        # BCE-with-logits (softplus form): numerically stable, one exp + one
        # log per element (vs sigmoid + two clamped logs).
        bce = jnp.maximum(z, 0.0) - z * t + jnp.log(1.0 + jnp.exp(-jnp.abs(z)))
    else:
        x = z
        # torch.binary_cross_entropy clamps the log terms at -100.
        log_p = jnp.maximum(jnp.log(x), -100.0)
        log_1mp = jnp.maximum(jnp.log(1.0 - x), -100.0)
        bce = -(t * log_p + (1.0 - t) * log_1mp)

    br, ln = x.shape
    g = br // 8

    def fold(v):  # (br, 128) -> (8, 128): pure vreg-wise VPU adds
        return jnp.sum(v.reshape(g, 8, ln), axis=0)

    o_ref[0, 0] += fold(x * t)
    o_ref[0, 1] += fold(x)
    o_ref[0, 2] += fold(t)
    o_ref[0, 3] += fold(bce)


def _round_up(a, b):
    return pl.cdiv(a, b) * b


def dice_bce_loss(inputs, targets, smooth=1.0, activation=False):
    """Pallas implementation of DiceBCELoss.forward.

    (weight / size_average are unused, matching the reference module.)
    """
    n_valid = int(inputs.size)
    x_flat = jnp.ravel(inputs)
    t_flat = jnp.ravel(targets)
    if t_flat.dtype == jnp.bool_:
        t_flat = t_flat.astype(jnp.float32)

    # Lane-dense layout: rows of 128 lanes, sublane-aligned to 8 rows.
    rows_data = _round_up(pl.cdiv(n_valid, LANES), 8)
    num_blocks = pl.cdiv(rows_data, MAX_BLOCK_ROWS)
    nsplit = 2 if num_blocks > 1 else 1           # v7x: one chunk per TensorCore
    num_blocks = _round_up(num_blocks, nsplit)
    block_rows = _round_up(pl.cdiv(rows_data, num_blocks), 8)  # <= MAX_BLOCK_ROWS
    rows = num_blocks * block_rows
    steps = num_blocks // nsplit

    pad = rows * LANES - n_valid
    if pad:
        # Pad values contribute exactly 0 to every partial sum:
        #   activation=False: x=0, t=0  -> x*t=0, bce = -(1 * log(1)) = 0
        #   activation=True : z=-1e9,t=0 -> sigmoid(z)=0, softplus-BCE = 0
        pad_x = -1e9 if activation else 0.0
        x_flat = jnp.pad(x_flat, (0, pad), constant_values=pad_x)
        t_flat = jnp.pad(t_flat, (0, pad))

    x2d = x_flat.reshape(rows, LANES)
    t2d = t_flat.reshape(rows, LANES)

    kernel = functools.partial(_dice_bce_kernel, activation=bool(activation))

    partials = pl.pallas_call(
        kernel,
        out_shape=jax.ShapeDtypeStruct((nsplit, 4, 8, LANES), jnp.float32),
        grid_spec=pltpu.PrefetchScalarGridSpec(
            num_scalar_prefetch=0,
            grid=(nsplit, steps),
            in_specs=[
                pl.BlockSpec((block_rows, LANES), lambda c, s: (c * steps + s, 0)),
                pl.BlockSpec((block_rows, LANES), lambda c, s: (c * steps + s, 0)),
            ],
            out_specs=pl.BlockSpec((1, 4, 8, LANES), lambda c, s: (c, 0, 0, 0)),
        ),
        compiler_params=pltpu.CompilerParams(
            dimension_semantics=("parallel", "arbitrary"),
            vmem_limit_bytes=32 * 1024 * 1024,
        ),
    )(x2d, t2d)

    # Tiny final reduce + scalar combine (outside the kernel).
    sums = jnp.sum(partials, axis=(0, 2, 3))       # (4,)
    inter, sum_x, sum_t, bce_sum = sums[0], sums[1], sums[2], sums[3]
    smooth = jnp.float32(smooth)
    dice_loss = 1.0 - (2.0 * inter + smooth) / (sum_x + sum_t + smooth)
    bce_mean = bce_sum / jnp.float32(n_valid)
    return bce_mean + dice_loss


def _reference(inputs, targets, smooth=1.0, activation=False):
    x = jnp.ravel(inputs).astype(jnp.float32)
    t = jnp.ravel(targets).astype(jnp.float32)
    if activation:
        x = jax.nn.sigmoid(x)
    inter = jnp.sum(x * t)
    dice = 1.0 - (2.0 * inter + smooth) / (jnp.sum(x) + jnp.sum(t) + smooth)
    log_p = jnp.maximum(jnp.log(x), -100.0)
    log_1mp = jnp.maximum(jnp.log(1.0 - x), -100.0)
    bce = jnp.mean(-(t * log_p + (1.0 - t) * log_1mp))
    return bce + dice


if __name__ == "__main__":
    key = jax.random.PRNGKey(0)
    k1, k2, k3 = jax.random.split(key, 3)

    # Module default: activation=False, inputs are probabilities.
    probs = jax.random.uniform(k1, (2, 4, 16, 16), jnp.float32,
                               minval=1e-4, maxval=1.0 - 1e-4)
    targets = (jax.random.uniform(k2, (2, 4, 16, 16)) > 0.5).astype(jnp.float32)

    loss = jax.block_until_ready(
        dice_bce_loss(probs, targets, smooth=1.0, activation=False))
    ref = _reference(probs, targets, smooth=1.0, activation=False)
    assert jnp.allclose(loss, ref, rtol=1e-5, atol=1e-5), (loss, ref)

    # activation=True path (logits in, sigmoid applied inside).
    logits = jax.random.normal(k3, (2, 4, 16, 16), jnp.float32)
    loss2 = jax.block_until_ready(
        dice_bce_loss(logits, targets, smooth=1.0, activation=True))
    ref2 = _reference(logits, targets, smooth=1.0, activation=True)
    assert jnp.allclose(loss2, ref2, rtol=1e-5, atol=1e-5), (loss2, ref2)

    print("KERNEL_OK")
</pallas_src>

<mosaic_0001>
module attributes {stable_mosaic.version = 11 : i64} {
  func.func @_dice_bce_kernel(%arg0: i32, %arg1: i32, %arg2: memref<16x128xf32, #tpu.memory_space<vmem>>, %arg3: memref<16x128xf32, #tpu.memory_space<vmem>>, %arg4: memref<1x4x8x128xf32, #tpu.memory_space<vmem>>) attributes {dimension_semantics = [#tpu.dimension_semantics<parallel>, #tpu.dimension_semantics<arbitrary>], iteration_bounds = array<i64: 1, 1>, scalar_prefetch = 0 : i64, scratch_operands = 0 : i64, tpu.core_type = #tpu.core_type<tc>, window_params = [{transform_indices = @transform_0, window_bounds = array<i64: 16, 128>}, {transform_indices = @transform_1, window_bounds = array<i64: 16, 128>}, {transform_indices = @transform_2, window_bounds = array<i64: 1, 4, 8, 128>}]} {
    %c0_i32 = arith.constant 0 : i32
    %0 = arith.cmpi eq, %arg1, %c0_i32 : i32
    %1 = arith.extui %0 : i1 to i32
    %c0_i32_0 = arith.constant 0 : i32
    %2 = arith.cmpi ne, %1, %c0_i32_0 : i32
    scf.if %2 {
      %cst_41 = arith.constant 0.000000e+00 : f32
      %53 = vector.broadcast %cst_41 : f32 to vector<1x4x8x128xf32>
      %c0_42 = arith.constant 0 : index
      %c0_43 = arith.constant 0 : index
      %c0_44 = arith.constant 0 : index
      %c0_45 = arith.constant 0 : index
      %54 = vector.load %arg4[%c0_42, %c0_43, %c0_44, %c0_45] : memref<1x4x8x128xf32, #tpu.memory_space<vmem>>, vector<1x4x8x128xf32>
      tpu.vector_store %arg4[%c0_42, %c0_43, %c0_44, %c0_45], %53 {strides = array<i32>} : memref<1x4x8x128xf32, #tpu.memory_space<vmem>>, vector<1x4x8x128xf32>,
    } else {
    }
    %c0 = arith.constant 0 : index
    %c0_1 = arith.constant 0 : index
    %3 = vector.load %arg2[%c0, %c0_1] : memref<16x128xf32, #tpu.memory_space<vmem>>, vector<16x128xf32>
    %c0_2 = arith.constant 0 : index
    %c0_3 = arith.constant 0 : index
    %4 = vector.load %arg3[%c0_2, %c0_3] : memref<16x128xf32, #tpu.memory_space<vmem>>, vector<16x128xf32>
    %5 = math.log %3 : vector<16x128xf32>
    %cst = arith.constant -1.000000e+02 : f32
    %6 = vector.broadcast %cst : f32 to vector<16x128xf32>
    %7 = arith.maximumf %5, %6 : vector<16x128xf32>
    %cst_4 = arith.constant 1.000000e+00 : f32
    %8 = vector.broadcast %cst_4 : f32 to vector<16x128xf32>
    %9 = arith.subf %8, %3 : vector<16x128xf32>
    %10 = math.log %9 : vector<16x128xf32>
    %cst_5 = arith.constant -1.000000e+02 : f32
    %11 = vector.broadcast %cst_5 : f32 to vector<16x128xf32>
    %12 = arith.maximumf %10, %11 : vector<16x128xf32>
    %13 = arith.mulf %4, %7 : vector<16x128xf32>
    %cst_6 = arith.constant 1.000000e+00 : f32
    %14 = vector.broadcast %cst_6 : f32 to vector<16x128xf32>
    %15 = arith.subf %14, %4 : vector<16x128xf32>
    %16 = arith.mulf %15, %12 : vector<16x128xf32>
    %17 = arith.addf %13, %16 : vector<16x128xf32>
    %cst_7 = arith.constant 0.000000e+00 : f32
    %18 = vector.broadcast %cst_7 : f32 to vector<16x128xf32>
    %19 = arith.subf %18, %17 : vector<16x128xf32>
    %c0_8 = arith.constant 0 : index
    %c0_9 = arith.constant 0 : index
    %c0_10 = arith.constant 0 : index
    %c0_11 = arith.constant 0 : index
    %20 = vector.load %arg4[%c0_8, %c0_9, %c0_10, %c0_11] : memref<1x4x8x128xf32, #tpu.memory_space<vmem>>, vector<1x1x8x128xf32>
    %21 = vector.shape_cast %20 : vector<1x1x8x128xf32> to vector<8x128xf32>
    %22 = arith.mulf %3, %4 : vector<16x128xf32>
    %23 = vector.shape_cast %22 : vector<16x128xf32> to vector<2x8x128xf32>
    %cst_12 = arith.constant dense<0.000000e+00> : vector<8x128xf32>
    %24 = vector.multi_reduction <add>, %23, %cst_12 [0] : vector<2x8x128xf32> to vector<8x128xf32>
    %25 = arith.addf %21, %24 : vector<8x128xf32>
    %c0_13 = arith.constant 0 : index
    %c0_14 = arith.constant 0 : index
    %c0_15 = arith.constant 0 : index
    %c0_16 = arith.constant 0 : index
    %26 = vector.load %arg4[%c0_13, %c0_14, %c0_15, %c0_16] : memref<1x4x8x128xf32, #tpu.memory_space<vmem>>, vector<1x1x8x128xf32>
    %27 = vector.shape_cast %26 : vector<1x1x8x128xf32> to vector<8x128xf32>
    %28 = vector.shape_cast %25 : vector<8x128xf32> to vector<1x1x8x128xf32>
    tpu.vector_store %arg4[%c0_13, %c0_14, %c0_15, %c0_16], %28 {strides = array<i32>} : memref<1x4x8x128xf32, #tpu.memory_space<vmem>>, vector<1x1x8x128xf32>,
    %c0_17 = arith.constant 0 : index
    %c1 = arith.constant 1 : index
    %c0_18 = arith.constant 0 : index
    %c0_19 = arith.constant 0 : index
    %29 = vector.load %arg4[%c0_17, %c1, %c0_18, %c0_19] : memref<1x4x8x128xf32, #tpu.memory_space<vmem>>, vector<1x1x8x128xf32>
    %30 = vector.shape_cast %29 : vector<1x1x8x128xf32> to vector<8x128xf32>
    %31 = vector.shape_cast %3 : vector<16x128xf32> to vector<2x8x128xf32>
    %cst_20 = arith.constant dense<0.000000e+00> : vector<8x128xf32>
    %32 = vector.multi_reduction <add>, %31, %cst_20 [0] : vector<2x8x128xf32> to vector<8x128xf32>
    %33 = arith.addf %30, %32 : vector<8x128xf32>
    %c0_21 = arith.constant 0 : index
    %c1_22 = arith.constant 1 : index
    %c0_23 = arith.constant 0 : index
    %c0_24 = arith.constant 0 : index
    %34 = vector.load %arg4[%c0_21, %c1_22, %c0_23, %c0_24] : memref<1x4x8x128xf32, #tpu.memory_space<vmem>>, vector<1x1x8x128xf32>
    %35 = vector.shape_cast %34 : vector<1x1x8x128xf32> to vector<8x128xf32>
    %36 = vector.shape_cast %33 : vector<8x128xf32> to vector<1x1x8x128xf32>
    tpu.vector_store %arg4[%c0_21, %c1_22, %c0_23, %c0_24], %36 {strides = array<i32>} : memref<1x4x8x128xf32, #tpu.memory_space<vmem>>, vector<1x1x8x128xf32>,
    %c0_25 = arith.constant 0 : index
    %c2 = arith.constant 2 : index
    %c0_26 = arith.constant 0 : index
    %c0_27 = arith.constant 0 : index
    %37 = vector.load %arg4[%c0_25, %c2, %c0_26, %c0_27] : memref<1x4x8x128xf32, #tpu.memory_space<vmem>>, vector<1x1x8x128xf32>
    %38 = vector.shape_cast %37 : vector<1x1x8x128xf32> to vector<8x128xf32>
    %39 = vector.shape_cast %4 : vector<16x128xf32> to vector<2x8x128xf32>
    %cst_28 = arith.constant dense<0.000000e+00> : vector<8x128xf32>
    %40 = vector.multi_reduction <add>, %39, %cst_28 [0] : vector<2x8x128xf32> to vector<8x128xf32>
    %41 = arith.addf %38, %40 : vector<8x128xf32>
    %c0_29 = arith.constant 0 : index
    %c2_30 = arith.constant 2 : index
    %c0_31 = arith.constant 0 : index
    %c0_32 = arith.constant 0 : index
    %42 = vector.load %arg4[%c0_29, %c2_30, %c0_31, %c0_32] : memref<1x4x8x128xf32, #tpu.memory_space<vmem>>, vector<1x1x8x128xf32>
    %43 = vector.shape_cast %42 : vector<1x1x8x128xf32> to vector<8x128xf32>
    %44 = vector.shape_cast %41 : vector<8x128xf32> to vector<1x1x8x128xf32>
    tpu.vector_store %arg4[%c0_29, %c2_30, %c0_31, %c0_32], %44 {strides = array<i32>} : memref<1x4x8x128xf32, #tpu.memory_space<vmem>>, vector<1x1x8x128xf32>,
    %c0_33 = arith.constant 0 : index
    %c3 = arith.constant 3 : index
    %c0_34 = arith.constant 0 : index
    %c0_35 = arith.constant 0 : index
    %45 = vector.load %arg4[%c0_33, %c3, %c0_34, %c0_35] : memref<1x4x8x128xf32, #tpu.memory_space<vmem>>, vector<1x1x8x128xf32>
    %46 = vector.shape_cast %45 : vector<1x1x8x128xf32> to vector<8x128xf32>
    %47 = vector.shape_cast %19 : vector<16x128xf32> to vector<2x8x128xf32>
    %cst_36 = arith.constant dense<0.000000e+00> : vector<8x128xf32>
    %48 = vector.multi_reduction <add>, %47, %cst_36 [0] : vector<2x8x128xf32> to vector<8x128xf32>
    %49 = arith.addf %46, %48 : vector<8x128xf32>
    %c0_37 = arith.constant 0 : index
    %c3_38 = arith.constant 3 : index
    %c0_39 = arith.constant 0 : index
    %c0_40 = arith.constant 0 : index
    %50 = vector.load %arg4[%c0_37, %c3_38, %c0_39, %c0_40] : memref<1x4x8x128xf32, #tpu.memory_space<vmem>>, vector<1x1x8x128xf32>
    %51 = vector.shape_cast %50 : vector<1x1x8x128xf32> to vector<8x128xf32>
    %52 = vector.shape_cast %49 : vector<8x128xf32> to vector<1x1x8x128xf32>
    tpu.vector_store %arg4[%c0_37, %c3_38, %c0_39, %c0_40], %52 {strides = array<i32>} : memref<1x4x8x128xf32, #tpu.memory_space<vmem>>, vector<1x1x8x128xf32>,
    return
  }
  func.func @transform_0(%arg0: i32, %arg1: i32) -> (i32, i32) {
    %c1_i32 = arith.constant 1 : i32
    %0 = arith.muli %arg0, %c1_i32 : i32
    %1 = arith.addi %0, %arg1 : i32
    %c0_i32 = arith.constant 0 : i32
    %c0_i32_0 = arith.constant 0 : i32
    return %1, %c0_i32 : i32, i32
  }
  func.func @transform_1(%arg0: i32, %arg1: i32) -> (i32, i32) {
    %c1_i32 = arith.constant 1 : i32
    %0 = arith.muli %arg0, %c1_i32 : i32
    %1 = arith.addi %0, %arg1 : i32
    %c0_i32 = arith.constant 0 : i32
    %c0_i32_0 = arith.constant 0 : i32
    return %1, %c0_i32 : i32, i32
  }
  func.func @transform_2(%arg0: i32, %arg1: i32) -> (i32, i32, i32, i32) {
    %c0_i32 = arith.constant 0 : i32
    %c0_i32_0 = arith.constant 0 : i32
    %c0_i32_1 = arith.constant 0 : i32
    %c0_i32_2 = arith.constant 0 : i32
    return %arg0, %c0_i32, %c0_i32_0, %c0_i32_1 : i32, i32, i32, i32
  }
}

</mosaic_0001>

<llo_original>
// kernel: tpu_custom_call.1
$region0: #{tpu_custom_call.1}
  #allocation0 [shape = 'u32[]', space=smem, size = 0x4, offset = 0x4, fixed_abs, tag = 'smem constant byte address 0x4 - core index']
  #allocation1 [shape = 'u32[144,128]{1,0:T(1,128)}', space=vmem, size = 0x12000, scoped, tag = 'internal scratch']
  %s0 = inlined_call_operand.hbm [shape: f32[16,128], index: 0, kind: input, shape index: {}]
  %s1 = inlined_call_operand.hbm [shape: f32[16,128], index: 1, kind: input, shape index: {}]
  %s2 = inlined_call_operand.hbm [shape: f32[1,4,8,128], index: 2, kind: output, shape index: {}]
  %s3 = sld [smem:[#allocation0]]
  $region30: #{tpu_custom_call.1} parent=0
    _
  %s5 = ssub.s32 1, %s3
  %s6 = scalar_select 0, %s5, %s3
  $region1: #{tpu_custom_call.1} parent=0
    #allocation2 [shape = 'u8[8192]{0}', space=vmem, size = 0x2000, scoped, tag = 'input window, operand 0, single buffered']
    #allocation3 [shape = 's32[1]{0}', space=sflag, size = 0x4, scoped, tag = 'scoped memory for tpu_custom_call.1']
    #allocation4 [shape = 's32[1]{0}', space=sflag, size = 0x4, scoped, tag = 'scoped memory for tpu_custom_call.1']
    #allocation5 [shape = 'u8[8192]{0}', space=vmem, size = 0x2000, scoped, tag = 'input window, operand 1, single buffered']
    #allocation6 [shape = 's32[1]{0}', space=sflag, size = 0x4, scoped, tag = 'scoped memory for tpu_custom_call.1']
    #allocation7 [shape = 'u8[16384]{0}', space=vmem, size = 0x4000, scoped, tag = 'output window, operand 0, single buffered']
    %7 = vsyncpa [#allocation3], 0
    %8 = vsyncpa [#allocation6], 0
    %9 = vsyncpa [#allocation4], 0
    // Predicated region
    $region2: #{tpu_custom_call.1} parent=1 // pred_check
      _
    $region3: #{tpu_custom_call.1} parent=1 // pred_check_branch
      %11 = sbr.rel (0) target = $region5
    $region4: #{tpu_custom_call.1} parent=1 // pred_region
      %s12 = sadd.s32 0, 0
      %s13 = smul.u32 2, %s12
      %s15 = ssub.s32 256, 256
      %16 = vsyncadd [#allocation3], %s15
      %s17 = smul.addr %s13, 128
      %s18 = scalar_lea.hbm %s0, %s17
      %s19 = sshll.u32 [#allocation2], 4
      %s20 = int_to_ptr.vmem [resolvable:$true] %s19
      %25 = dma.hbm_to_vmem [thread:$0]  %s18, 256, %s20, [#allocation3], 128, 128, 8
    $region5: #{tpu_custom_call.1} parent=1 // pred_fallthru
      _
    // Predicated region
    $region6: #{tpu_custom_call.1} parent=1 // pred_check
      _
    $region7: #{tpu_custom_call.1} parent=1 // pred_check_branch
      %27 = sbr.rel (0) target = $region9
    $region8: #{tpu_custom_call.1} parent=1 // pred_region
      %s28 = sadd.s32 0, 0
      %s29 = smul.u32 2, %s28
      %s31 = ssub.s32 256, 256
      %32 = vsyncadd [#allocation6], %s31
      %s33 = smul.addr %s29, 128
      %s34 = scalar_lea.hbm %s1, %s33
      %s35 = sshll.u32 [#allocation5], 4
      %s36 = int_to_ptr.vmem [resolvable:$true] %s35
      %41 = dma.hbm_to_vmem [thread:$0]  %s34, 256, %s36, [#allocation6], 128, 128, 8
    $region9: #{tpu_custom_call.1} parent=1 // pred_fallthru
      _
    // Predicated region
    $region10: #{tpu_custom_call.1} parent=1 // pred_check
      _
    $region11: #{tpu_custom_call.1} parent=1 // pred_check_branch
      %43 = sbr.rel (0) target = $region13
    $region12: #{tpu_custom_call.1} parent=1 // pred_region
      %44 = dma.done [#allocation3], 256
    $region13: #{tpu_custom_call.1} parent=1 // pred_fallthru
      _
    // Predicated region
    $region14: #{tpu_custom_call.1} parent=1 // pred_check
      _
    $region15: #{tpu_custom_call.1} parent=1 // pred_check_branch
      %46 = sbr.rel (0) target = $region17
    $region16: #{tpu_custom_call.1} parent=1 // pred_region
      %47 = dma.done [#allocation6], 256
    $region17: #{tpu_custom_call.1} parent=1 // pred_fallthru
      _
    %s48 = sadd.s32 0, 0
    %s49 = smul.u32 2, %s48
    %s50 = sadd.s32 0, 0
    %s51 = smul.u32 2, %s50
    %p52 = scmp.eq.s32.totalorder 0, 0
    // Predicated region
    $region18: #{tpu_custom_call.1} parent=1 // pred_check
      %p53 = pneg %p52
    $region19: #{tpu_custom_call.1} parent=1 // pred_check_branch
      %55 = sbr.rel (%p53) target = $region21
    $region20: #{tpu_custom_call.1} parent=1 // pred_region
      %56 = vst [vmem:[#allocation7] sm:$0xff] 0.0
      %57 = vst [vmem:[#allocation7 + $0x8] sm:$0xff] 0.0
      %58 = vst [vmem:[#allocation7 + $0x10] sm:$0xff] 0.0
      %59 = vst [vmem:[#allocation7 + $0x18] sm:$0xff] 0.0
    $region21: #{tpu_custom_call.1} parent=1 // pred_fallthru
      _
    %v60 = vld [vmem:[#allocation2] sm:$0xff]
    %v61 = vld [vmem:[#allocation2 + $0x8] sm:$0xff]
    %v62 = vld [vmem:[#allocation5] sm:$0xff]
    %v63 = vld [vmem:[#allocation5 + $0x8] sm:$0xff]
    %v64 = vlog2.pop %v60
    %v65 = vmul.f32 %v64, 0.6931472
    %v66 = vlog2.pop %v61
    %v67 = vmul.f32 %v66, 0.6931472
    %v68 = vmax.f32 %v65, -100.0
    %v69 = vmax.f32 %v67, -100.0
    %v70 = vsub.f32 1.0, %v60
    %v71 = vsub.f32 1.0, %v61
    %v72 = vlog2.pop %v70
    %v73 = vmul.f32 %v72, 0.6931472
    %v74 = vlog2.pop %v71
    %v75 = vmul.f32 %v74, 0.6931472
    %v76 = vmax.f32 %v73, -100.0
    %v77 = vmax.f32 %v75, -100.0
    %v78 = vmul.f32 %v62, %v68
    %v79 = vmul.f32 %v63, %v69
    %v80 = vsub.f32 1.0, %v62
    %v81 = vsub.f32 1.0, %v63
    %v82 = vmul.f32 %v80, %v76
    %v83 = vmul.f32 %v81, %v77
    %v84 = vadd.f32 %v78, %v82
    %v85 = vadd.f32 %v79, %v83
    %v86 = vsub.f32 0.0, %v84
    %v87 = vsub.f32 0.0, %v85
    %v88 = vld [vmem:[#allocation7] sm:$0xff]
    %v89 = vmul.f32 %v60, %v62
    %v90 = vmul.f32 %v61, %v63
    %v91 = vadd.f32 %v89, %v90
    %v92 = vadd.f32 %v88, %v91
    %93 = vst [vmem:[#allocation7] sm:$0xff] %v92
    %s94 = scalar_lea.vmem [#allocation7], 8
    %v95 = vld [vmem:[%s94] sm:$0xff]
    %v96 = vadd.f32 %v60, %v61
    %v97 = vadd.f32 %v95, %v96
    %98 = vst [vmem:[%s94] sm:$0xff] %v97
    %s99 = scalar_lea.vmem [#allocation7], 16
    %v100 = vld [vmem:[%s99] sm:$0xff]
    %v101 = vadd.f32 %v62, %v63
    %v102 = vadd.f32 %v100, %v101
    %103 = vst [vmem:[%s99] sm:$0xff] %v102
    %s104 = scalar_lea.vmem [#allocation7], 24
    %v105 = vld [vmem:[%s104] sm:$0xff]
    %v106 = vadd.f32 %v86, %v87
    %v107 = vadd.f32 %v105, %v106
    %108 = vst [vmem:[%s104] sm:$0xff] %v107
    // Predicated region
    $region22: #{tpu_custom_call.1} parent=1 // pred_check
      _
    $region23: #{tpu_custom_call.1} parent=1 // pred_check_branch
      %110 = sbr.rel (0) target = $region25
    $region24: #{tpu_custom_call.1} parent=1 // pred_region
      %s112 = ssub.s32 512, 512
      %113 = vsyncadd [#allocation4], %s112
      %s114 = sshll.u32 [#allocation7], 4
      %s115 = int_to_ptr.vmem [resolvable:$true] %s114
      %120 = dma.vmem_to_hbm [thread:$0]  %s115, 512, %s2, [#allocation4], 128, 128, 8
    $region25: #{tpu_custom_call.1} parent=1 // pred_fallthru
      _
    // Predicated region
    $region26: #{tpu_custom_call.1} parent=1 // pred_check
      _
    $region27: #{tpu_custom_call.1} parent=1 // pred_check_branch
      %122 = sbr.rel (0) target = $region29
    $region28: #{tpu_custom_call.1} parent=1 // pred_region
      %123 = dma.done [#allocation4], 512
    $region29: #{tpu_custom_call.1} parent=1 // pred_fallthru
      _
    %124 = vsyncpa [#allocation3], 1
    %125 = vsyncpa [#allocation6], 1
    %126 = vsyncpa [#allocation4], 1

</llo_original>
